<compile_context>
chip_gen: v5e
topology: v5e:2x2
jax: 0.10.0
libtpu: 0.0.40
codegen_flags: <defaults>
</compile_context>

<pallas_src>
import functools

import jax
import jax.numpy as jnp
from jax.experimental import pallas as pl
from jax.experimental.pallas import tpu as pltpu

BN_EPS = 1e-5


def _bn_relu(h2d, gamma, beta, n_groups, bpg):
    """Training-mode BatchNorm1d + ReLU with independent stats per stacked group.

    h2d: (n_groups * bpg, H) f32. gamma/beta: (1, H) f32. bpg should be a multiple
    of 8 so the (G, bpg, H) reshape stays sublane-aligned (no layout copies).
    """
    H = h2d.shape[-1]
    h = h2d.reshape(n_groups, bpg, H)
    mean = jnp.mean(h, axis=1, keepdims=True)
    msq = jnp.mean(h * h, axis=1, keepdims=True)
    var = jnp.maximum(msq - mean * mean, 0.0)  # clamp f32 cancellation (rsqrt NaN guard)
    h = (h - mean) * jax.lax.rsqrt(var + BN_EPS)
    h = h * gamma + beta
    return jnp.maximum(h, 0.0).reshape(h2d.shape)


def idm_kernel(eb_ref, ea_ref, w_ref, vec_ref, o_ref, *, E, H, A, n_groups, bpg):
    # Activations to bf16 for the MXU (f32 accumulate). BN math stays in f32.
    eb = eb_ref[...].astype(jnp.bfloat16)
    ea = ea_ref[...].astype(jnp.bfloat16)

    # Static, sublane-aligned row slices of the packed slabs (no tile-crossing copies).
    w0a = w_ref[0:E, :]                     # Linear0 weight, emb_before half   (E, H)
    w0b = w_ref[E:2 * E, :]                 # Linear0 weight, emb_after half    (E, H)
    w1 = w_ref[2 * E:2 * E + H, :]          # Linear1 weight                    (H, H)
    w2 = w_ref[2 * E + H:2 * E + 2 * H, :]  # head weight, lane-padded to H     (H, H)
    g0, be0 = vec_ref[0:1, :], vec_ref[1:2, :]
    g1, be1 = vec_ref[2:3, :], vec_ref[3:4, :]
    b2 = vec_ref[4:5, :]

    # Block 0: fused concat == two MXU matmuls on the split w0 halves.
    # Linear biases b0/b1 omitted: exactly cancelled by training-mode BN mean subtraction.
    h = (jnp.dot(eb, w0a, preferred_element_type=jnp.float32)
         + jnp.dot(ea, w0b, preferred_element_type=jnp.float32))
    h = _bn_relu(h, g0, be0, n_groups, bpg)

    # Block 1.
    h = jnp.dot(h.astype(jnp.bfloat16), w1, preferred_element_type=jnp.float32)
    h = _bn_relu(h, g1, be1, n_groups, bpg)

    # Head: padded columns of w2 / b2 are zeros; store only the true A lanes directly
    # (masked vst of a few lanes is negligible; avoids a wrapper-side slice dispatch).
    y = jnp.dot(h.astype(jnp.bfloat16), w2, preferred_element_type=jnp.float32) + b2
    o_ref[...] = y[:, :A].astype(o_ref.dtype)


@functools.partial(jax.jit, static_argnames=("action_dim", "n_groups"))
def inverse_dynamics_forward(emb_before, emb_after, w_slab, vec_slab, *,
                             action_dim, n_groups=1):
    """Run G = n_groups independent forwards stacked along rows.

    emb_before/emb_after: (n_groups * batch, E) f32. Each contiguous `batch`-row group
    gets its own BatchNorm statistics (exactly the module applied per group).
    Returns (n_groups * batch, action_dim) f32.
    """
    rows, E = emb_before.shape
    H = w_slab.shape[1]
    assert w_slab.shape[0] == 2 * E + 2 * H, "weight slab layout mismatch"
    assert rows % n_groups == 0, "rows must split evenly into groups"
    bpg = rows // n_groups

    kernel = functools.partial(idm_kernel, E=E, H=H, A=action_dim,
                               n_groups=n_groups, bpg=bpg)
    vmem = pl.BlockSpec(memory_space=pltpu.MemorySpace.VMEM)
    return pl.pallas_call(
        kernel,
        out_shape=jax.ShapeDtypeStruct((rows, action_dim), jnp.float32),
        in_specs=[vmem] * 4,
        out_specs=vmem,
    )(emb_before, emb_after, w_slab, vec_slab)


def init_params(key, embedding_dim, hidden_dim, action_dim):
    """Deterministic synthetic init mirroring the PyTorch module. Linear W as [in, out]."""
    ks = jax.random.split(key, 6)
    in0 = embedding_dim * 2

    def lin(k, fan_in, fan_out):
        bound = 1.0 / jnp.sqrt(fan_in)
        kw, kb = jax.random.split(k)
        w = jax.random.uniform(kw, (fan_in, fan_out), jnp.float32, -bound, bound)
        b = jax.random.uniform(kb, (1, fan_out), jnp.float32, -bound, bound)
        return w, b

    w0, b0 = lin(ks[0], in0, hidden_dim)
    w1, b1 = lin(ks[1], hidden_dim, hidden_dim)
    w2, b2 = lin(ks[2], hidden_dim, action_dim)

    # BatchNorm affine params (PyTorch init is gamma=1, beta=0; perturb deterministically
    # so the affine path is exercised).
    g0 = 1.0 + 0.01 * jax.random.normal(ks[3], (1, hidden_dim), jnp.float32)
    be0 = 0.01 * jax.random.normal(ks[4], (1, hidden_dim), jnp.float32)
    g1 = 1.0 + 0.01 * jax.random.normal(ks[5], (1, hidden_dim), jnp.float32)
    be1 = jnp.zeros((1, hidden_dim), jnp.float32)

    return (w0, b0, g0, be0, w1, b1, g1, be1, w2, b2)


def pack_kernel_params(params, embedding_dim, action_dim):
    """One-time repack of module params into kernel layout.

    - w0 split into the emb_before / emb_after halves (fused concat).
    - b0/b1 dropped (exact no-op under training-mode BatchNorm).
    - head weight lane-padded to H columns; all four weights stacked into one bf16 slab.
    - the five (1,H) vectors packed into a single (8,H) f32 slab (one DMA, one VMEM tile).
    """
    (w0, b0, g0, be0, w1, b1, g1, be1, w2, b2) = params
    del b0, b1  # cancelled exactly by training-mode BN batch-mean subtraction
    E = embedding_dim
    H = w1.shape[0]
    assert E % 8 == 0 and H % 8 == 0, "sublane-aligned static slab offsets required"
    assert action_dim <= H, "head wider than hidden not supported by the packed slab"

    w2p = jnp.zeros((H, H), jnp.float32).at[:, :action_dim].set(w2)
    w_slab = jnp.concatenate([w0[:E], w0[E:], w1, w2p], axis=0).astype(jnp.bfloat16)

    vec = jnp.zeros((8, H), jnp.float32)
    vec = (vec.at[0, :].set(g0[0]).at[1, :].set(be0[0])
              .at[2, :].set(g1[0]).at[3, :].set(be1[0])
              .at[4, :action_dim].set(b2[0]))
    return w_slab, vec


def reference_forward(emb_before, emb_after, params, matmul_dtype=jnp.float32):
    """Pure-JAX reference mirroring the PyTorch module (training-mode BN, with biases).

    matmul_dtype lets us build a matched-precision (bf16-operand) reference for tight
    verification of the kernel logic, independent of bf16 quantization error.
    """
    (w0, b0, g0, be0, w1, b1, g1, be1, w2, b2) = params
    x = jnp.concatenate([emb_before, emb_after], axis=1)

    def mm(a, w):
        return jnp.dot(a.astype(matmul_dtype), w.astype(matmul_dtype),
                       preferred_element_type=jnp.float32)

    def block(h, w, b, g, be):
        h = mm(h, w) + b
        mean = jnp.mean(h, axis=0, keepdims=True)
        var = jnp.mean((h - mean) ** 2, axis=0, keepdims=True)
        h = (h - mean) / jnp.sqrt(var + BN_EPS) * g + be
        return jnp.maximum(h, 0.0)

    h = block(x, w0, b0, g0, be0)
    h = block(h, w1, b1, g1, be1)
    return mm(h, w2) + b2


if __name__ == "__main__":
    # Module-default shapes: embedding_dim=32, hidden_dim=128, action_dim=1,
    # n_layers=1, action_type='continuous'. One "module batch" is 8 rows.
    E, H, A = 32, 128, 1
    BPG = 8   # rows per BatchNorm-coupled batch (one original-module forward)
    G = 4     # independent forwards stacked along M in a single kernel launch

    key = jax.random.PRNGKey(0)
    k_b, k_a, k_p = jax.random.split(key, 3)
    params = init_params(k_p, E, H, A)
    w_slab, vec_slab = pack_kernel_params(params, E, A)

    # --- Base case: exactly the original module (single batch of 8, n_groups=1). ---
    eb1 = jax.random.normal(k_b, (BPG, E), jnp.float32)
    ea1 = jax.random.normal(k_a, (BPG, E), jnp.float32)
    y1 = inverse_dynamics_forward(eb1, ea1, w_slab, vec_slab, action_dim=A, n_groups=1)
    y1 = jax.block_until_ready(y1)
    assert y1.shape == (BPG, A), y1.shape

    ref_matched = reference_forward(eb1, ea1, params, matmul_dtype=jnp.bfloat16)
    ref_f32 = reference_forward(eb1, ea1, params, matmul_dtype=jnp.float32)
    # Tight check vs matched-precision reference: verifies kernel logic (fused concat,
    # bias cancellation, single-sweep per-group BN, head padding/slicing).
    assert jnp.allclose(y1, ref_matched, atol=5e-3, rtol=5e-3), "mismatch vs matched ref"
    # Loose sanity check vs the full-f32 reference: bounds bf16 quantization error.
    assert jnp.allclose(y1, ref_f32, atol=1.5e-1, rtol=1.5e-1), "bf16 drift vs f32 ref"

    # --- Stacked case: G independent forwards in one launch, per-group BN stats. ---
    kb2, ka2 = jax.random.split(jax.random.PRNGKey(1))
    ebg = jax.random.normal(kb2, (G * BPG, E), jnp.float32)
    eag = jax.random.normal(ka2, (G * BPG, E), jnp.float32)
    yg = inverse_dynamics_forward(ebg, eag, w_slab, vec_slab, action_dim=A, n_groups=G)
    yg = jax.block_until_ready(yg)
    assert yg.shape == (G * BPG, A), yg.shape

    refs = [reference_forward(ebg[g * BPG:(g + 1) * BPG], eag[g * BPG:(g + 1) * BPG],
                              params, matmul_dtype=jnp.bfloat16) for g in range(G)]
    assert jnp.allclose(yg, jnp.concatenate(refs, axis=0), atol=5e-3, rtol=5e-3), \
        "mismatch vs per-group references"

    print("KERNEL_OK")
</pallas_src>

<mosaic_0001>
module attributes {stable_mosaic.version = 11 : i64} {
  func.func @idm_kernel(%arg0: memref<8x32xf32, #tpu.memory_space<vmem>>, %arg1: memref<8x32xf32, #tpu.memory_space<vmem>>, %arg2: memref<320x128xbf16, #tpu.memory_space<vmem>>, %arg3: memref<8x128xf32, #tpu.memory_space<vmem>>, %arg4: memref<8x1xf32, #tpu.memory_space<vmem>>) attributes {dimension_semantics = [], scalar_prefetch = 0 : i64, scratch_operands = 0 : i64, tpu.core_type = #tpu.core_type<tc>} {
    %c0 = arith.constant 0 : index
    %c0_0 = arith.constant 0 : index
    %0 = vector.load %arg0[%c0, %c0_0] : memref<8x32xf32, #tpu.memory_space<vmem>>, vector<8x32xf32>
    %1 = arith.truncf %0 : vector<8x32xf32> to vector<8x32xbf16>
    %c0_1 = arith.constant 0 : index
    %c0_2 = arith.constant 0 : index
    %2 = vector.load %arg1[%c0_1, %c0_2] : memref<8x32xf32, #tpu.memory_space<vmem>>, vector<8x32xf32>
    %3 = arith.truncf %2 : vector<8x32xf32> to vector<8x32xbf16>
    %c0_3 = arith.constant 0 : index
    %c0_4 = arith.constant 0 : index
    %4 = vector.load %arg2[%c0_3, %c0_4] : memref<320x128xbf16, #tpu.memory_space<vmem>>, vector<32x128xbf16>
    %c32 = arith.constant 32 : index
    %c0_5 = arith.constant 0 : index
    %5 = vector.load %arg2[%c32, %c0_5] : memref<320x128xbf16, #tpu.memory_space<vmem>>, vector<32x128xbf16>
    %c64 = arith.constant 64 : index
    %c0_6 = arith.constant 0 : index
    %6 = vector.load %arg2[%c64, %c0_6] : memref<320x128xbf16, #tpu.memory_space<vmem>>, vector<128x128xbf16>
    %c192 = arith.constant 192 : index
    %c0_7 = arith.constant 0 : index
    %7 = vector.load %arg2[%c192, %c0_7] : memref<320x128xbf16, #tpu.memory_space<vmem>>, vector<128x128xbf16>
    %c0_8 = arith.constant 0 : index
    %c0_9 = arith.constant 0 : index
    %8 = vector.load %arg3[%c0_8, %c0_9] : memref<8x128xf32, #tpu.memory_space<vmem>>, vector<1x128xf32>
    %c1 = arith.constant 1 : index
    %c0_10 = arith.constant 0 : index
    %9 = vector.load %arg3[%c1, %c0_10] : memref<8x128xf32, #tpu.memory_space<vmem>>, vector<1x128xf32>
    %c2 = arith.constant 2 : index
    %c0_11 = arith.constant 0 : index
    %10 = vector.load %arg3[%c2, %c0_11] : memref<8x128xf32, #tpu.memory_space<vmem>>, vector<1x128xf32>
    %c3 = arith.constant 3 : index
    %c0_12 = arith.constant 0 : index
    %11 = vector.load %arg3[%c3, %c0_12] : memref<8x128xf32, #tpu.memory_space<vmem>>, vector<1x128xf32>
    %c4 = arith.constant 4 : index
    %c0_13 = arith.constant 0 : index
    %12 = vector.load %arg3[%c4, %c0_13] : memref<8x128xf32, #tpu.memory_space<vmem>>, vector<1x128xf32>
    %cst = arith.constant dense<0.000000e+00> : vector<8x128xf32>
    %13 = tpu.matmul %1, %4, %cst {dimension_numbers = #tpu.dot_dimension_numbers<[1], [0], [0], [1], [0, 0, 1, 1], [], []>} : vector<8x32xbf16>, vector<32x128xbf16>, vector<8x128xf32> -> vector<8x128xf32>
    %cst_14 = arith.constant dense<0.000000e+00> : vector<8x128xf32>
    %14 = tpu.matmul %3, %5, %cst_14 {dimension_numbers = #tpu.dot_dimension_numbers<[1], [0], [0], [1], [0, 0, 1, 1], [], []>} : vector<8x32xbf16>, vector<32x128xbf16>, vector<8x128xf32> -> vector<8x128xf32>
    %15 = arith.addf %13, %14 : vector<8x128xf32>
    %16 = vector.shape_cast %15 : vector<8x128xf32> to vector<1x8x128xf32>
    %cst_15 = arith.constant dense<0.000000e+00> : vector<1x128xf32>
    %17 = vector.multi_reduction <add>, %16, %cst_15 [1] : vector<1x8x128xf32> to vector<1x128xf32>
    %18 = vector.shape_cast %17 : vector<1x128xf32> to vector<1x1x128xf32>
    %cst_16 = arith.constant 8.000000e+00 : f32
    %19 = vector.broadcast %cst_16 : f32 to vector<1x1x128xf32>
    %20 = arith.divf %18, %19 : vector<1x1x128xf32>
    %21 = arith.mulf %16, %16 : vector<1x8x128xf32>
    %cst_17 = arith.constant dense<0.000000e+00> : vector<1x128xf32>
    %22 = vector.multi_reduction <add>, %21, %cst_17 [1] : vector<1x8x128xf32> to vector<1x128xf32>
    %23 = vector.shape_cast %22 : vector<1x128xf32> to vector<1x1x128xf32>
    %cst_18 = arith.constant 8.000000e+00 : f32
    %24 = vector.broadcast %cst_18 : f32 to vector<1x1x128xf32>
    %25 = arith.divf %23, %24 : vector<1x1x128xf32>
    %26 = arith.mulf %20, %20 : vector<1x1x128xf32>
    %27 = arith.subf %25, %26 : vector<1x1x128xf32>
    %cst_19 = arith.constant 0.000000e+00 : f32
    %28 = vector.broadcast %cst_19 : f32 to vector<1x1x128xf32>
    %29 = arith.maximumf %27, %28 : vector<1x1x128xf32>
    %30 = vector.broadcast %20 : vector<1x1x128xf32> to vector<1x8x128xf32>
    %31 = arith.subf %16, %30 : vector<1x8x128xf32>
    %cst_20 = arith.constant 9.99999974E-6 : f32
    %32 = vector.broadcast %cst_20 : f32 to vector<1x1x128xf32>
    %33 = arith.addf %29, %32 : vector<1x1x128xf32>
    %34 = math.rsqrt %33 : vector<1x1x128xf32>
    %35 = vector.broadcast %34 : vector<1x1x128xf32> to vector<1x8x128xf32>
    %36 = arith.mulf %31, %35 : vector<1x8x128xf32>
    %37 = vector.shape_cast %8 : vector<1x128xf32> to vector<1x1x128xf32>
    %38 = vector.broadcast %37 : vector<1x1x128xf32> to vector<1x8x128xf32>
    %39 = arith.mulf %36, %38 : vector<1x8x128xf32>
    %40 = vector.shape_cast %9 : vector<1x128xf32> to vector<1x1x128xf32>
    %41 = vector.broadcast %40 : vector<1x1x128xf32> to vector<1x8x128xf32>
    %42 = arith.addf %39, %41 : vector<1x8x128xf32>
    %cst_21 = arith.constant 0.000000e+00 : f32
    %43 = vector.broadcast %cst_21 : f32 to vector<1x8x128xf32>
    %44 = arith.maximumf %42, %43 : vector<1x8x128xf32>
    %45 = vector.shape_cast %44 : vector<1x8x128xf32> to vector<8x128xf32>
    %46 = arith.truncf %45 : vector<8x128xf32> to vector<8x128xbf16>
    %cst_22 = arith.constant dense<0.000000e+00> : vector<8x128xf32>
    %47 = tpu.matmul %46, %6, %cst_22 {dimension_numbers = #tpu.dot_dimension_numbers<[1], [0], [0], [1], [0, 0, 1, 1], [], []>} : vector<8x128xbf16>, vector<128x128xbf16>, vector<8x128xf32> -> vector<8x128xf32>
    %48 = vector.shape_cast %47 : vector<8x128xf32> to vector<1x8x128xf32>
    %cst_23 = arith.constant dense<0.000000e+00> : vector<1x128xf32>
    %49 = vector.multi_reduction <add>, %48, %cst_23 [1] : vector<1x8x128xf32> to vector<1x128xf32>
    %50 = vector.shape_cast %49 : vector<1x128xf32> to vector<1x1x128xf32>
    %cst_24 = arith.constant 8.000000e+00 : f32
    %51 = vector.broadcast %cst_24 : f32 to vector<1x1x128xf32>
    %52 = arith.divf %50, %51 : vector<1x1x128xf32>
    %53 = arith.mulf %48, %48 : vector<1x8x128xf32>
    %cst_25 = arith.constant dense<0.000000e+00> : vector<1x128xf32>
    %54 = vector.multi_reduction <add>, %53, %cst_25 [1] : vector<1x8x128xf32> to vector<1x128xf32>
    %55 = vector.shape_cast %54 : vector<1x128xf32> to vector<1x1x128xf32>
    %cst_26 = arith.constant 8.000000e+00 : f32
    %56 = vector.broadcast %cst_26 : f32 to vector<1x1x128xf32>
    %57 = arith.divf %55, %56 : vector<1x1x128xf32>
    %58 = arith.mulf %52, %52 : vector<1x1x128xf32>
    %59 = arith.subf %57, %58 : vector<1x1x128xf32>
    %cst_27 = arith.constant 0.000000e+00 : f32
    %60 = vector.broadcast %cst_27 : f32 to vector<1x1x128xf32>
    %61 = arith.maximumf %59, %60 : vector<1x1x128xf32>
    %62 = vector.broadcast %52 : vector<1x1x128xf32> to vector<1x8x128xf32>
    %63 = arith.subf %48, %62 : vector<1x8x128xf32>
    %cst_28 = arith.constant 9.99999974E-6 : f32
    %64 = vector.broadcast %cst_28 : f32 to vector<1x1x128xf32>
    %65 = arith.addf %61, %64 : vector<1x1x128xf32>
    %66 = math.rsqrt %65 : vector<1x1x128xf32>
    %67 = vector.broadcast %66 : vector<1x1x128xf32> to vector<1x8x128xf32>
    %68 = arith.mulf %63, %67 : vector<1x8x128xf32>
    %69 = vector.shape_cast %10 : vector<1x128xf32> to vector<1x1x128xf32>
    %70 = vector.broadcast %69 : vector<1x1x128xf32> to vector<1x8x128xf32>
    %71 = arith.mulf %68, %70 : vector<1x8x128xf32>
    %72 = vector.shape_cast %11 : vector<1x128xf32> to vector<1x1x128xf32>
    %73 = vector.broadcast %72 : vector<1x1x128xf32> to vector<1x8x128xf32>
    %74 = arith.addf %71, %73 : vector<1x8x128xf32>
    %cst_29 = arith.constant 0.000000e+00 : f32
    %75 = vector.broadcast %cst_29 : f32 to vector<1x8x128xf32>
    %76 = arith.maximumf %74, %75 : vector<1x8x128xf32>
    %77 = vector.shape_cast %76 : vector<1x8x128xf32> to vector<8x128xf32>
    %78 = arith.truncf %77 : vector<8x128xf32> to vector<8x128xbf16>
    %cst_30 = arith.constant dense<0.000000e+00> : vector<8x128xf32>
    %79 = tpu.matmul %78, %7, %cst_30 {dimension_numbers = #tpu.dot_dimension_numbers<[1], [0], [0], [1], [0, 0, 1, 1], [], []>} : vector<8x128xbf16>, vector<128x128xbf16>, vector<8x128xf32> -> vector<8x128xf32>
    %80 = vector.broadcast %12 : vector<1x128xf32> to vector<8x128xf32>
    %81 = arith.addf %79, %80 : vector<8x128xf32>
    %82 = vector.extract_strided_slice %81 {offsets = [0, 0], sizes = [8, 1], strides = [1, 1]} : vector<8x128xf32> to vector<8x1xf32>
    %c0_31 = arith.constant 0 : index
    %c0_32 = arith.constant 0 : index
    %83 = vector.load %arg4[%c0_31, %c0_32] : memref<8x1xf32, #tpu.memory_space<vmem>>, vector<8x1xf32>
    tpu.vector_store %arg4[%c0_31, %c0_32], %82 {strides = array<i32>} : memref<8x1xf32, #tpu.memory_space<vmem>>, vector<8x1xf32>,
    return
  }
}

</mosaic_0001>

<llo_original>
// kernel: inverse_dynamics_forward.1
$region0: #{inverse_dynamics_forward.1}
  #allocation0 [shape = 'u32[]', space=smem, size = 0x4, offset = 0x4, fixed_abs, tag = 'smem constant byte address 0x4 - core index']
  #allocation1 [shape = 'u32[72,128]{1,0:T(1,128)}', space=vmem, size = 0x9000, scoped, tag = 'internal scratch']
  %s0 = inlined_call_operand.hbm [shape: f32[8,32], index: 0, kind: input, shape index: {}]
  %s1 = inlined_call_operand.hbm [shape: f32[8,32], index: 1, kind: input, shape index: {}]
  %s2 = inlined_call_operand.hbm [shape: bf16[320,128], index: 2, kind: input, shape index: {}]
  %s3 = inlined_call_operand.hbm [shape: f32[8,128], index: 3, kind: input, shape index: {}]
  %s4 = inlined_call_operand.vmem [shape: f32[8,1], index: 4, kind: output, shape index: {}]
  %s5 = sld [smem:[#allocation0]]
  $region42: #{inverse_dynamics_forward.1} parent=0
    _
  %s7 = ssub.s32 1, %s5
  %s8 = scalar_select 0, %s7, %s5
  $region1: #{inverse_dynamics_forward.1} parent=0
    #allocation2 [shape = 'u8[4096]{0}', space=vmem, size = 0x1000, scoped, tag = 'input window, operand 0, single buffered']
    #allocation3 [shape = 's32[1]{0}', space=sflag, size = 0x4, scoped, tag = 'scoped memory for inverse_dynamics_forward.1']
    #allocation4 [shape = 'u8[4096]{0}', space=vmem, size = 0x1000, scoped, tag = 'input window, operand 1, single buffered']
    #allocation5 [shape = 's32[1]{0}', space=sflag, size = 0x4, scoped, tag = 'scoped memory for inverse_dynamics_forward.1']
    #allocation6 [shape = 'u8[81920]{0}', space=vmem, size = 0x14000, scoped, tag = 'input window, operand 2, single buffered']
    #allocation7 [shape = 'u8[4096]{0}', space=vmem, size = 0x1000, scoped, tag = 'input window, operand 3, single buffered']
    #allocation8 [shape = 's32[1]{0}', space=sflag, size = 0x4, scoped, tag = 'scoped memory for inverse_dynamics_forward.1']
    %9 = vsyncpa [#allocation3], 0
    %10 = vsyncpa [#allocation5], 0
    %11 = vsyncpa [#allocation8], 0
    // Predicated region
    $region2: #{inverse_dynamics_forward.1} parent=1 // pred_check
      _
    $region3: #{inverse_dynamics_forward.1} parent=1 // pred_check_branch
      %13 = sbr.rel (0) target = $region5
    $region4: #{inverse_dynamics_forward.1} parent=1 // pred_region
      %15 = vsyncadd [#allocation3], 0
      %s17 = sshll.u32 %s0, 4
      %s18 = int_to_ptr.hbm [resolvable:$true] %s17
      %s19 = sshll.u32 [#allocation2], 4
      %s20 = int_to_ptr.vmem [resolvable:$true] %s19
      %22 = dma.hbm_to_vmem [thread:$0]  %s18, 128, %s20, [#allocation3]
    $region5: #{inverse_dynamics_forward.1} parent=1 // pred_fallthru
      _
    // Predicated region
    $region6: #{inverse_dynamics_forward.1} parent=1 // pred_check
      _
    $region7: #{inverse_dynamics_forward.1} parent=1 // pred_check_branch
      %24 = sbr.rel (0) target = $region9
    $region8: #{inverse_dynamics_forward.1} parent=1 // pred_region
      %26 = vsyncadd [#allocation5], 0
      %s28 = sshll.u32 %s1, 4
      %s29 = int_to_ptr.hbm [resolvable:$true] %s28
      %s30 = sshll.u32 [#allocation4], 4
      %s31 = int_to_ptr.vmem [resolvable:$true] %s30
      %33 = dma.hbm_to_vmem [thread:$0]  %s29, 128, %s31, [#allocation5]
    $region9: #{inverse_dynamics_forward.1} parent=1 // pred_fallthru
      _
    // Predicated region
    $region10: #{inverse_dynamics_forward.1} parent=1 // pred_check
      _
    $region11: #{inverse_dynamics_forward.1} parent=1 // pred_check_branch
      %35 = sbr.rel (0) target = $region13
    $region12: #{inverse_dynamics_forward.1} parent=1 // pred_region
      %37 = vsyncadd [#allocation5], 0
      %s38 = sshll.u32 %s2, 4
      %s39 = int_to_ptr.hbm [resolvable:$true] %s38
      %s40 = sshll.u32 [#allocation6], 4
      %s41 = int_to_ptr.vmem [resolvable:$true] %s40
      %46 = dma.hbm_to_vmem [thread:$0]  %s39, 2560, %s41, [#allocation5], 64, 64, 4
    $region13: #{inverse_dynamics_forward.1} parent=1 // pred_fallthru
      _
    // Predicated region
    $region14: #{inverse_dynamics_forward.1} parent=1 // pred_check
      _
    $region15: #{inverse_dynamics_forward.1} parent=1 // pred_check_branch
      %48 = sbr.rel (0) target = $region17
    $region16: #{inverse_dynamics_forward.1} parent=1 // pred_region
      %50 = vsyncadd [#allocation8], 0
      %s52 = sshll.u32 %s3, 4
      %s53 = int_to_ptr.hbm [resolvable:$true] %s52
      %s54 = sshll.u32 [#allocation7], 4
      %s55 = int_to_ptr.vmem [resolvable:$true] %s54
      %57 = dma.hbm_to_vmem [thread:$0]  %s53, 128, %s55, [#allocation8]
    $region17: #{inverse_dynamics_forward.1} parent=1 // pred_fallthru
      _
    // Predicated region
    $region18: #{inverse_dynamics_forward.1} parent=1 // pred_check
      _
    $region19: #{inverse_dynamics_forward.1} parent=1 // pred_check_branch
      %59 = sbr.rel (0) target = $region21
    $region20: #{inverse_dynamics_forward.1} parent=1 // pred_region
      %61 = dma.done [#allocation3], 128
    $region21: #{inverse_dynamics_forward.1} parent=1 // pred_fallthru
      _
    // Predicated region
    $region22: #{inverse_dynamics_forward.1} parent=1 // pred_check
      _
    $region23: #{inverse_dynamics_forward.1} parent=1 // pred_check_branch
      %63 = sbr.rel (0) target = $region25
    $region24: #{inverse_dynamics_forward.1} parent=1 // pred_region
      %65 = dma.done [#allocation5], 128
    $region25: #{inverse_dynamics_forward.1} parent=1 // pred_fallthru
      _
    // Predicated region
    $region26: #{inverse_dynamics_forward.1} parent=1 // pred_check
      _
    $region27: #{inverse_dynamics_forward.1} parent=1 // pred_check_branch
      %67 = sbr.rel (0) target = $region29
    $region28: #{inverse_dynamics_forward.1} parent=1 // pred_region
      %69 = dma.done [#allocation5], 2560
    $region29: #{inverse_dynamics_forward.1} parent=1 // pred_fallthru
      _
    // Predicated region
    $region30: #{inverse_dynamics_forward.1} parent=1 // pred_check
      _
    $region31: #{inverse_dynamics_forward.1} parent=1 // pred_check_branch
      %71 = sbr.rel (0) target = $region33
    $region32: #{inverse_dynamics_forward.1} parent=1 // pred_region
      %73 = dma.done [#allocation8], 128
    $region33: #{inverse_dynamics_forward.1} parent=1 // pred_fallthru
      _
    %v75 = vld [vmem:[#allocation2] sm:$0xff]
    %v76 = vpack.c.bf16 %v75, %v75
    %v77 = vld [vmem:[#allocation4] sm:$0xff]
    %v78 = vpack.c.bf16 %v77, %v77
    %v79 = vld [vmem:[#allocation6] sm:$0xf]
    %v80 = vld [vmem:[#allocation6 + $0x4] sm:$0xf]
    %v81 = vld [vmem:[#allocation6 + $0x8] sm:$0xf]
    %v82 = vld [vmem:[#allocation6 + $0xc] sm:$0xf]
    %v83 = vld [vmem:[#allocation6 + $0x10] sm:$0xf]
    %v84 = vld [vmem:[#allocation6 + $0x14] sm:$0xf]
    %v85 = vld [vmem:[#allocation6 + $0x18] sm:$0xf]
    %v86 = vld [vmem:[#allocation6 + $0x1c] sm:$0xf]
    %v87 = vld [vmem:[#allocation6 + $0x20] sm:$0xf]
    %v88 = vld [vmem:[#allocation6 + $0x24] sm:$0xf]
    %v89 = vld [vmem:[#allocation6 + $0x28] sm:$0xf]
    %v90 = vld [vmem:[#allocation6 + $0x2c] sm:$0xf]
    %v91 = vld [vmem:[#allocation6 + $0x30] sm:$0xf]
    %v92 = vld [vmem:[#allocation6 + $0x34] sm:$0xf]
    %v93 = vld [vmem:[#allocation6 + $0x38] sm:$0xf]
    %v94 = vld [vmem:[#allocation6 + $0x3c] sm:$0xf]
    %v95 = vld [vmem:[#allocation6 + $0x40] sm:$0xf]
    %v96 = vld [vmem:[#allocation6 + $0x44] sm:$0xf]
    %v97 = vld [vmem:[#allocation6 + $0x48] sm:$0xf]
    %v98 = vld [vmem:[#allocation6 + $0x4c] sm:$0xf]
    %v99 = vld [vmem:[#allocation6 + $0x50] sm:$0xf]
    %v100 = vld [vmem:[#allocation6 + $0x54] sm:$0xf]
    %v101 = vld [vmem:[#allocation6 + $0x58] sm:$0xf]
    %v102 = vld [vmem:[#allocation6 + $0x5c] sm:$0xf]
    %v103 = vld [vmem:[#allocation6 + $0x60] sm:$0xf]
    %v104 = vld [vmem:[#allocation6 + $0x64] sm:$0xf]
    %v105 = vld [vmem:[#allocation6 + $0x68] sm:$0xf]
    %v106 = vld [vmem:[#allocation6 + $0x6c] sm:$0xf]
    %v107 = vld [vmem:[#allocation6 + $0x70] sm:$0xf]
    %v108 = vld [vmem:[#allocation6 + $0x74] sm:$0xf]
    %v109 = vld [vmem:[#allocation6 + $0x78] sm:$0xf]
    %v110 = vld [vmem:[#allocation6 + $0x7c] sm:$0xf]
    %v111 = vld [vmem:[#allocation6 + $0x80] sm:$0xf]
    %v112 = vld [vmem:[#allocation6 + $0x84] sm:$0xf]
    %v113 = vld [vmem:[#allocation6 + $0x88] sm:$0xf]
    %v114 = vld [vmem:[#allocation6 + $0x8c] sm:$0xf]
    %v115 = vld [vmem:[#allocation6 + $0x90] sm:$0xf]
    %v116 = vld [vmem:[#allocation6 + $0x94] sm:$0xf]
    %v117 = vld [vmem:[#allocation6 + $0x98] sm:$0xf]
    %v118 = vld [vmem:[#allocation6 + $0x9c] sm:$0xf]
    %v119 = vld [vmem:[#allocation7] sm:$0x1]
    %v120 = vld [vmem:[#allocation7 + $0x1] sm:$0x1]
    %v121 = vld [vmem:[#allocation7 + $0x2] sm:$0x1]
    %v122 = vld [vmem:[#allocation7 + $0x3] sm:$0x1]
    %v123 = vld [vmem:[#allocation7 + $0x4] sm:$0x1]
    %v128 = vunpack.c.l.b16 %v83
    %v129 = vunpack.c.l.b16 %v84
    %v130 = vunpack.c.l.b16 %v85
    %v131 = vunpack.c.l.b16 %v86
    %v132 = vpack.c.b16 %v129, %v128
    %v133 = vpack.c.b16 %v131, %v130
    %vm136 = vcmask 261120
    %v138 = vsel %vm136, %v78, 0
    %140 = vmatpush.bf16.msra.mxu0 0
    %141 = vmatpush.bf16.msra.mxu0 0
    %142 = vmatpush.bf16.msra.mxu0 0
    %143 = vmatpush.bf16.msra.mxu0 0
    %144 = vmatpush.bf16.msra.mxu0 0
    %145 = vmatpush.bf16.msra.mxu0 0
    %146 = vmatpush.bf16.msra.mxu0 %v133
    %147 = vmatpush.bf16.msra.mxu0 %v132
    %148 = vmatmul.bf16.gmra.mxu0 %v138
    %v149 = vpop.f32.mrf.mxu0
    %v150 = vadd.f32 0.0, %v149
    %v151 = vpop.f32.mrf.mxu0
    %152 = vdwg.mxu0
    %v157 = vunpack.c.l.b16 %v79
    %v158 = vunpack.c.l.b16 %v80
    %v159 = vunpack.c.l.b16 %v81
    %v160 = vunpack.c.l.b16 %v82
    %v161 = vpack.c.b16 %v158, %v157
    %v162 = vpack.c.b16 %v160, %v159
    %v166 = vsel %vm136, %v76, 0
    %168 = vmatpush.bf16.msra.mxu0 0
    %169 = vmatpush.bf16.msra.mxu0 0
    %170 = vmatpush.bf16.msra.mxu0 0
    %171 = vmatpush.bf16.msra.mxu0 0
    %172 = vmatpush.bf16.msra.mxu0 0
    %173 = vmatpush.bf16.msra.mxu0 0
    %174 = vmatpush.bf16.msra.mxu0 %v162
    %175 = vmatpush.bf16.msra.mxu0 %v161
    %176 = vmatmul.bf16.gmra.mxu0 %v166
    %v177 = vpop.f32.mrf.mxu0
    %v178 = vadd.f32 %v150, %v177
    %v179 = vpop.f32.mrf.mxu0
    %180 = vdwg.mxu0
    %v181 = vrot.slane %v178, 4
    %v182 = vadd.f32 %v178, %v181
    %v183 = vrot.slane %v182, 2
    %v184 = vadd.f32 %v182, %v183
    %v185 = vrot.slane %v184, 1
    %v186 = vadd.f32 %v184, %v185
    %v187 = vrcp.pop 8.0
    %v188 = vmul.f32 8.0, %v187
    %v189 = vsub.f32 1.0, %v188
    %v190 = vmul.f32 %v187, %v189
    %v191 = vadd.f32 %v187, %v190
    %vm192 = vweird.f32 %v187
    %v193 = vsel %vm192, %v187, %v191
    %v194 = vmul.f32 %v186, %v193
    %v195 = vmul.f32 %v178, %v178
    %v196 = vrot.slane %v195, 4
    %v197 = vadd.f32 %v195, %v196
    %v198 = vrot.slane %v197, 2
    %v199 = vadd.f32 %v197, %v198
    %v200 = vrot.slane %v199, 1
    %v201 = vadd.f32 %v199, %v200
    %v202 = vmul.f32 %v201, %v193
    %v203 = vmul.f32 %v194, %v194
    %v204 = vsub.f32 %v202, %v203
    %v205 = vmax.f32 %v204, 0.0
    %v206 = vsub.f32 %v178, %v194
    %v207 = vadd.f32 %v205, 1e-05
    %v208 = vrsqrt.pop %v207
    %v209 = vmul.f32 %v208, %v207
    %v210 = vmul.f32 %v209, %v208
    %v211 = vmul.f32 0.5, %v210
    %v212 = vsub.f32 1.5, %v211
    %v213 = vmul.f32 %v208, %v212
    %vm214 = vweird.f32 %v207
    %vm215 = vweird.f32 %v208
    %vm216 = vmor %vm214, %vm215
    %v217 = vsel %vm216, %v208, %v213
    %v218 = vmul.f32 %v206, %v217
    %v219 = vperm.slane %v119, 0
    %v220 = vmul.f32 %v218, %v219
    %v221 = vperm.slane %v120, 0
    %v222 = vadd.f32 %v220, %v221
    %v223 = vmax.f32 %v222, 0.0
    %v224 = vpack.c.bf16 %v223, %v223
    %v241 = vunpack.c.l.b16 %v87
    %v242 = vunpack.c.l.b16 %v88
    %v243 = vunpack.c.l.b16 %v89
    %v244 = vunpack.c.l.b16 %v90
    %v245 = vunpack.c.l.b16 %v91
    %v246 = vunpack.c.l.b16 %v92
    %v247 = vunpack.c.l.b16 %v93
    %v248 = vunpack.c.l.b16 %v94
    %v249 = vunpack.c.l.b16 %v95
    %v250 = vunpack.c.l.b16 %v96
    %v251 = vunpack.c.l.b16 %v97
    %v252 = vunpack.c.l.b16 %v98
    %v253 = vunpack.c.l.b16 %v99
    %v254 = vunpack.c.l.b16 %v100
    %v255 = vunpack.c.l.b16 %v101
    %v256 = vunpack.c.l.b16 %v102
    %v257 = vpack.c.b16 %v242, %v241
    %v258 = vpack.c.b16 %v244, %v243
    %v259 = vpack.c.b16 %v246, %v245
    %v260 = vpack.c.b16 %v248, %v247
    %v261 = vpack.c.b16 %v250, %v249
    %v262 = vpack.c.b16 %v252, %v251
    %v263 = vpack.c.b16 %v254, %v253
    %v264 = vpack.c.b16 %v256, %v255
    %273 = vmatpush.bf16.msra.mxu0 %v264
    %274 = vmatpush.bf16.msra.mxu0 %v263
    %275 = vmatpush.bf16.msra.mxu0 %v262
    %276 = vmatpush.bf16.msra.mxu0 %v261
    %277 = vmatpush.bf16.msra.mxu0 %v260
    %278 = vmatpush.bf16.msra.mxu0 %v259
    %279 = vmatpush.bf16.msra.mxu0 %v258
    %280 = vmatpush.bf16.msra.mxu0 %v257
    %281 = vmatmul.bf16.gmra.mxu0 %v224
    %v282 = vpop.f32.mrf.mxu0
    %v283 = vadd.f32 0.0, %v282
    %v284 = vpop.f32.mrf.mxu0
    %285 = vdwg.mxu0
    %v286 = vrot.slane %v283, 4
    %v287 = vadd.f32 %v283, %v286
    %v288 = vrot.slane %v287, 2
    %v289 = vadd.f32 %v287, %v288
    %v290 = vrot.slane %v289, 1
    %v291 = vadd.f32 %v289, %v290
    %v292 = vmul.f32 %v291, %v193
    %v293 = vmul.f32 %v283, %v283
    %v294 = vrot.slane %v293, 4
    %v295 = vadd.f32 %v293, %v294
    %v296 = vrot.slane %v295, 2
    %v297 = vadd.f32 %v295, %v296
    %v298 = vrot.slane %v297, 1
    %v299 = vadd.f32 %v297, %v298
    %v300 = vmul.f32 %v299, %v193
    %v301 = vmul.f32 %v292, %v292
    %v302 = vsub.f32 %v300, %v301
    %v303 = vmax.f32 %v302, 0.0
    %v304 = vsub.f32 %v283, %v292
    %v305 = vadd.f32 %v303, 1e-05
    %v306 = vrsqrt.pop %v305
    %v307 = vmul.f32 %v306, %v305
    %v308 = vmul.f32 %v307, %v306
    %v309 = vmul.f32 0.5, %v308
    %v310 = vsub.f32 1.5, %v309
    %v311 = vmul.f32 %v306, %v310
    %vm312 = vweird.f32 %v305
    %vm313 = vweird.f32 %v306
    %vm314 = vmor %vm312, %vm313
    %v315 = vsel %vm314, %v306, %v311
    %v316 = vmul.f32 %v304, %v315
    %v317 = vperm.slane %v121, 0
    %v318 = vmul.f32 %v316, %v317
    %v319 = vperm.slane %v122, 0
    %v320 = vadd.f32 %v318, %v319
    %v321 = vmax.f32 %v320, 0.0
    %v322 = vpack.c.bf16 %v321, %v321
    %v323 = vperm.slane %v123, 0
    %v340 = vunpack.c.l.b16 %v103
    %v341 = vunpack.c.l.b16 %v104
    %v342 = vunpack.c.l.b16 %v105
    %v343 = vunpack.c.l.b16 %v106
    %v344 = vunpack.c.l.b16 %v107
    %v345 = vunpack.c.l.b16 %v108
    %v346 = vunpack.c.l.b16 %v109
    %v347 = vunpack.c.l.b16 %v110
    %v348 = vunpack.c.l.b16 %v111
    %v349 = vunpack.c.l.b16 %v112
    %v350 = vunpack.c.l.b16 %v113
    %v351 = vunpack.c.l.b16 %v114
    %v352 = vunpack.c.l.b16 %v115
    %v353 = vunpack.c.l.b16 %v116
    %v354 = vunpack.c.l.b16 %v117
    %v355 = vunpack.c.l.b16 %v118
    %v356 = vpack.c.b16 %v341, %v340
    %v357 = vpack.c.b16 %v343, %v342
    %v358 = vpack.c.b16 %v345, %v344
    %v359 = vpack.c.b16 %v347, %v346
    %v360 = vpack.c.b16 %v349, %v348
    %v361 = vpack.c.b16 %v351, %v350
    %v362 = vpack.c.b16 %v353, %v352
    %v363 = vpack.c.b16 %v355, %v354
    %372 = vmatpush.bf16.msra.mxu0 %v363
    %373 = vmatpush.bf16.msra.mxu0 %v362
    %374 = vmatpush.bf16.msra.mxu0 %v361
    %375 = vmatpush.bf16.msra.mxu0 %v360
    %376 = vmatpush.bf16.msra.mxu0 %v359
    %377 = vmatpush.bf16.msra.mxu0 %v358
    %378 = vmatpush.bf16.msra.mxu0 %v357
    %379 = vmatpush.bf16.msra.mxu0 %v356
    %380 = vmatmul.bf16.gmra.mxu0 %v322
    %v381 = vpop.f32.mrf.mxu0
    %v382 = vadd.f32 %v323, %v381
    %v383 = vpop.f32.mrf.mxu0
    %384 = vdwg.mxu0
    %vm385 = vcmask 7168
    %386 = vst.msk [vmem:[%s4] sm:$0xff] %vm385, %v382
    // Predicated region
    $region34: #{inverse_dynamics_forward.1} parent=1 // pred_check
      _
    $region35: #{inverse_dynamics_forward.1} parent=1 // pred_check_branch
      %388 = sbr.rel (0) target = $region37
    $region36: #{inverse_dynamics_forward.1} parent=1 // pred_region
      _
    $region37: #{inverse_dynamics_forward.1} parent=1 // pred_fallthru
      _
    // Predicated region
    $region38: #{inverse_dynamics_forward.1} parent=1 // pred_check
      _
    $region39: #{inverse_dynamics_forward.1} parent=1 // pred_check_branch
      %390 = sbr.rel (0) target = $region41
    $region40: #{inverse_dynamics_forward.1} parent=1 // pred_region
      _
    $region41: #{inverse_dynamics_forward.1} parent=1 // pred_fallthru
      _
    %391 = vsyncpa [#allocation3], 1
    %392 = vsyncpa [#allocation5], 1
    %393 = vsyncpa [#allocation8], 1

</llo_original>
